<compile_context>
chip_gen: v7x
topology: tpu7x:2x2x1
jax: 0.10.0
libtpu: 0.0.40
codegen_flags: <defaults>
</compile_context>

<pallas_src>
import functools

import numpy as np
import jax
import jax.numpy as jnp
from jax.experimental import pallas as pl
from jax.experimental.pallas import tpu as pltpu


def _round_up(x, m):
    return (x + m - 1) // m * m


def _floor_tile(t, pref=256):
    """Floor a row-tile candidate to a multiple of 256 (>=256) or 8 (below)."""
    t = int(t)
    if t >= pref:
        return (t // pref) * pref
    return max(8, (t // 8) * 8)


def _vmem_capacity_bytes():
    """Per-core VMEM capacity; conservative v7x fallback if the query fails."""
    try:
        return int(pltpu.get_tpu_info().vmem_capacity_bytes)
    except Exception:
        return 64 << 20


def prepare_weight(weight, matmul_dtype=jnp.float32):
    """One-time weight prep: optional cast + transpose to [in, out].

    Doing this once (ideally at parameter-prep time, outside the per-call
    path) gives the kernel a canonical (M,K)x(K,N) contraction with no
    in-kernel transpose and no repeated per-call cast passes.
    """
    wt = jnp.asarray(weight)
    if wt.dtype != np.dtype(matmul_dtype):
        wt = wt.astype(matmul_dtype)
    return wt.T


def _kernel_resident(x_ref, wt_ref, o_ref):
    # x_ref : (tm, D) row tile of the input
    # wt_ref: (D, D)  W^T ([in, out] layout), constant index -> fetched once
    # o_ref : (tm, D) output tile
    x = x_ref[...]
    y = jnp.dot(x.astype(wt_ref.dtype), wt_ref[...],
                preferred_element_type=jnp.float32)
    # Residual add in f32 (exact), then cast to the output dtype.
    o_ref[...] = (y + x.astype(jnp.float32)).astype(o_ref.dtype)


def _kernel_col_tiled(x_ref, wt_ref, o_ref, *, tn):
    # x_ref : (tm, D)  row tile of the input, resident across the inner j axis
    # wt_ref: (D, tn)  tn columns of W^T
    # o_ref : (tm, tn) output tile
    x = x_ref[...]
    y = jnp.dot(x.astype(wt_ref.dtype), wt_ref[...],
                preferred_element_type=jnp.float32)
    # Residual comes from the already-resident x row tile (no second x operand);
    # tn is a multiple of 128 so the slice is lane-aligned.
    start = pl.multiple_of(pl.program_id(1) * tn, 128)
    xr = x_ref[:, pl.ds(start, tn)]
    o_ref[...] = (y + xr.astype(jnp.float32)).astype(o_ref.dtype)


def full_rank_adversary(x, weight, *, matmul_dtype=jnp.float32,
                        weight_prepared=False, rows_per_tile=None,
                        vmem_budget_bytes=None):
    """y = x @ weight.T + x  (nn.Linear(dim, dim, bias=False) + residual).

    x: [..., dim].  weight: [dim, dim] in PyTorch [out, in] layout, unless
    weight_prepared=True, in which case it must already be prepare_weight()'s
    output ([in, out] layout, matmul dtype).  matmul_dtype=float32 matches the
    PyTorch module exactly; bfloat16 is an opt-in MXU fast path (the residual
    add stays exact f32).  rows_per_tile / vmem_budget_bytes are tuning/testing
    overrides.
    """
    dim = x.shape[-1]
    orig_shape = x.shape
    x2d = x.reshape(-1, dim)
    m = x2d.shape[0]

    wt = weight if weight_prepared else prepare_weight(weight, matmul_dtype)
    assert wt.shape == (dim, dim)

    x_itm = np.dtype(x2d.dtype).itemsize
    out_itm = x_itm
    w_itm = np.dtype(wt.dtype).itemsize

    vmem_cap = _vmem_capacity_bytes()
    # Tiling budget: ~75% of per-core VMEM (48 MiB on v7x, 96 MiB on v5e/v6e).
    budget = int(vmem_budget_bytes) if vmem_budget_bytes else (vmem_cap * 3) // 4

    resident_fixed = 2 * dim * dim * w_itm          # double-buffered resident W^T
    row_tile_cost = 2 * dim * (x_itm + out_itm)     # per-row cost of x + out tiles
    tm_floor = min(256, max(8, m))
    use_resident = resident_fixed + tm_floor * row_tile_cost <= budget

    if use_resident:
        # ---- small/medium dim: full W^T resident, 1-D grid over row tiles ----
        if rows_per_tile is not None:
            tm_target = max(8, _round_up(int(rows_per_tile), 8))
        else:
            # Memory-bound small-D regime: aim for >= 2 MiB of x per grid step
            # (e.g. ~4096 rows at D=128, ~1024 at D=512) to amortize per-step
            # pipeline overhead.
            tm_target = _round_up(max(256, (2 << 20) // max(dim * x_itm, 1)), 256)
        tm_budget = (budget - resident_fixed) // row_tile_cost
        tm_eff = min(tm_target, _floor_tile(tm_budget))
        if tm_eff >= m:
            tm_eff = m
        grid = (pl.cdiv(m, tm_eff),)
        in_specs = [
            pl.BlockSpec((tm_eff, dim), lambda i: (i, 0)),   # x row tile
            pl.BlockSpec((dim, dim), lambda i: (0, 0)),      # W^T, fetched once
        ]
        out_spec = pl.BlockSpec((tm_eff, dim), lambda i: (i, 0))
        kernel = _kernel_resident
        dims_sem = ("parallel",)
        d_eff = dim
        need = resident_fixed + tm_eff * row_tile_cost
    else:
        # ---- large dim: column-tile W^T over an inner grid axis ----
        # Pad the feature dim to a multiple of 128 if needed (zero pad in both
        # x and W^T -> padded output columns are zero and sliced off).
        d_eff = dim if dim % 128 == 0 else _round_up(dim, 128)
        if d_eff != dim:
            x2d = jnp.pad(x2d, ((0, 0), (0, d_eff - dim)))
            wt = jnp.pad(wt, ((0, d_eff - dim), (0, d_eff - dim)))
        tn = 512 if d_eff % 512 == 0 else (256 if d_eff % 256 == 0 else 128)
        while tn > 128 and 2 * d_eff * tn * w_itm > budget // 2:
            tn //= 2
        # W^T is re-streamed once per row tile, so make the row tile as large
        # as the budget allows (each doubling of tm halves W HBM traffic).
        denom = 2 * (d_eff * x_itm + tn * out_itm)
        tm_budget = max(256, (budget - 2 * d_eff * tn * w_itm) // denom)
        if rows_per_tile is not None:
            tm_budget = min(tm_budget, max(8, _round_up(int(rows_per_tile), 8)))
        tm_eff = _floor_tile(tm_budget)
        if tm_eff >= m:
            tm_eff = m
        grid = (pl.cdiv(m, tm_eff), d_eff // tn)
        in_specs = [
            pl.BlockSpec((tm_eff, d_eff), lambda i, j: (i, 0)),  # resident over j
            pl.BlockSpec((d_eff, tn), lambda i, j: (0, j)),      # W^T column tile
        ]
        out_spec = pl.BlockSpec((tm_eff, tn), lambda i, j: (i, j))
        kernel = functools.partial(_kernel_col_tiled, tn=tn)
        # Only the row axis is "parallel": sharding the column axis across v7x
        # cores would make both cores re-stream the full x slab.
        dims_sem = ("parallel", "arbitrary")
        need = (2 * tm_eff * d_eff * x_itm + 2 * d_eff * tn * w_itm
                + 2 * tm_eff * tn * out_itm)

    # VMEM limit: enough for the tiles plus headroom, but never the full
    # physical capacity (leave room for compiler-internal scratch, esp. v7x).
    vmem_limit = int(min(max(need + (8 << 20), 32 << 20), vmem_cap - (8 << 20)))

    cost = pl.CostEstimate(
        flops=2 * m * dim * dim,
        transcendentals=0,
        bytes_accessed=m * dim * x_itm + dim * dim * w_itm + m * dim * out_itm,
    )

    out = pl.pallas_call(
        kernel,
        out_shape=jax.ShapeDtypeStruct((m, d_eff), x.dtype),
        grid=grid,
        in_specs=in_specs,
        out_specs=out_spec,
        compiler_params=pltpu.CompilerParams(
            dimension_semantics=dims_sem,
            vmem_limit_bytes=vmem_limit,
        ),
        cost_estimate=cost,
    )(x2d, wt)

    if d_eff != dim:
        out = out[:, :dim]
    return out.reshape(orig_shape)


if __name__ == "__main__":
    key = jax.random.PRNGKey(0)
    batch, seq, dim = 2, 8, 128
    kx, kw = jax.random.split(key)
    x = jax.random.normal(kx, (batch, seq, dim), dtype=jnp.float32)

    # 1) Module-faithful init: weight is zeroed -> output must equal x.
    w0 = jnp.zeros((dim, dim), dtype=jnp.float32)
    y0 = jax.block_until_ready(full_rank_adversary(x, w0))
    assert y0.shape == x.shape
    assert jnp.allclose(y0, x, atol=1e-6, rtol=0)

    # 2) Non-trivial weight, default f32 path (module-faithful numerics).
    w1 = 0.02 * jax.random.normal(kw, (dim, dim), dtype=jnp.float32)
    y_ref = jnp.einsum("bsd,od->bso", x, w1) + x
    y1 = jax.block_until_ready(full_rank_adversary(x, w1))
    assert jnp.allclose(y1, y_ref, atol=1e-4, rtol=1e-4)

    # 3) Opt-in bf16 MXU path (residual stays exact f32): looser tolerance.
    y2 = jax.block_until_ready(
        full_rank_adversary(x, w1, matmul_dtype=jnp.bfloat16))
    assert jnp.allclose(y2, y_ref, atol=2e-2, rtol=2e-2)

    # 4) Prepared-weight path (transpose/cast hoisted out of the call).
    wt1 = prepare_weight(w1, jnp.float32)
    y3 = jax.block_until_ready(
        full_rank_adversary(x, wt1, weight_prepared=True))
    assert jnp.allclose(y3, y_ref, atol=1e-4, rtol=1e-4)

    # 5) Ragged row count: m=20 with an 8-row tile exercises the pl.cdiv grid
    #    and the masked final block (no wrapper-side padding pass).
    x_r = jax.random.normal(kx, (20, dim), dtype=jnp.float32)
    y_r = jax.block_until_ready(
        full_rank_adversary(x_r, w1, rows_per_tile=8))
    y_r_ref = x_r @ w1.T + x_r
    assert jnp.allclose(y_r, y_r_ref, atol=1e-4, rtol=1e-4)

    # 6) Force the column-tiled path with a tiny VMEM budget (dim=256, tn=128)
    #    to exercise the in-kernel residual slice + streamed W^T tiles.
    dim2 = 256
    kx2, kw2 = jax.random.split(kw)
    x_b = jax.random.normal(kx2, (batch, seq, dim2), dtype=jnp.float32)
    w_b = 0.02 * jax.random.normal(kw2, (dim2, dim2), dtype=jnp.float32)
    y_b_ref = jnp.einsum("bsd,od->bso", x_b, w_b) + x_b
    y_b = jax.block_until_ready(
        full_rank_adversary(x_b, w_b, vmem_budget_bytes=400 * 1024))
    assert jnp.allclose(y_b, y_b_ref, atol=1e-4, rtol=1e-4)

    print("KERNEL_OK")
</pallas_src>

<mosaic_0001>
module attributes {stable_mosaic.version = 11 : i64} {
  func.func @_kernel_resident(%arg0: i32, %arg1: memref<16x128xf32, #tpu.memory_space<vmem>>, %arg2: memref<128x128xf32, #tpu.memory_space<vmem>>, %arg3: memref<16x128xf32, #tpu.memory_space<vmem>>) attributes {dimension_semantics = [#tpu.dimension_semantics<parallel>], iteration_bounds = array<i64: 1>, scalar_prefetch = 0 : i64, scratch_operands = 0 : i64, tpu.core_type = #tpu.core_type<tc>, window_params = [{transform_indices = @transform_0, window_bounds = array<i64: 16, 128>}, {pipeline_mode = #tpu.pipeline_mode<synchronous>, transform_indices = @transform_1, window_bounds = array<i64: 128, 128>}, {transform_indices = @transform_2, window_bounds = array<i64: 16, 128>}]} {
    %c0 = arith.constant 0 : index
    %c0_0 = arith.constant 0 : index
    %0 = vector.load %arg1[%c0, %c0_0] : memref<16x128xf32, #tpu.memory_space<vmem>>, vector<16x128xf32>
    %c0_1 = arith.constant 0 : index
    %c0_2 = arith.constant 0 : index
    %1 = vector.load %arg2[%c0_1, %c0_2] : memref<128x128xf32, #tpu.memory_space<vmem>>, vector<128x128xf32>
    %cst = arith.constant dense<0.000000e+00> : vector<16x128xf32>
    %2 = tpu.matmul %0, %1, %cst {dimension_numbers = #tpu.dot_dimension_numbers<[1], [0], [0], [1], [0, 0, 1, 1], [], []>} : vector<16x128xf32>, vector<128x128xf32>, vector<16x128xf32> -> vector<16x128xf32>
    %3 = arith.addf %2, %0 : vector<16x128xf32>
    %c0_3 = arith.constant 0 : index
    %c0_4 = arith.constant 0 : index
    %4 = vector.load %arg3[%c0_3, %c0_4] : memref<16x128xf32, #tpu.memory_space<vmem>>, vector<16x128xf32>
    tpu.vector_store %arg3[%c0_3, %c0_4], %3 {strides = array<i32>} : memref<16x128xf32, #tpu.memory_space<vmem>>, vector<16x128xf32>,
    return
  }
  func.func @transform_0(%arg0: i32) -> (i32, i32) {
    %c0_i32 = arith.constant 0 : i32
    %c0_i32_0 = arith.constant 0 : i32
    return %arg0, %c0_i32 : i32, i32
  }
  func.func @transform_1(%arg0: i32) -> (i32, i32) {
    %c0_i32 = arith.constant 0 : i32
    %c0_i32_0 = arith.constant 0 : i32
    %c0_i32_1 = arith.constant 0 : i32
    return %c0_i32, %c0_i32_0 : i32, i32
  }
  func.func @transform_2(%arg0: i32) -> (i32, i32) {
    %c0_i32 = arith.constant 0 : i32
    %c0_i32_0 = arith.constant 0 : i32
    return %arg0, %c0_i32 : i32, i32
  }
}

</mosaic_0001>

<llo_original>
// kernel: tpu_custom_call.1
$region0: #{tpu_custom_call.1}
  #allocation0 [shape = 'u32[]', space=smem, size = 0x4, offset = 0x4, fixed_abs, tag = 'smem constant byte address 0x4 - core index']
  #allocation1 [shape = 'u32[144,128]{1,0:T(1,128)}', space=vmem, size = 0x12000, scoped, tag = 'internal scratch']
  %s0 = inlined_call_operand.hbm [shape: f32[16,128], index: 0, kind: input, shape index: {}]
  %s1 = inlined_call_operand.hbm [shape: f32[128,128], index: 1, kind: input, shape index: {}]
  %s2 = inlined_call_operand.hbm [shape: f32[16,128], index: 2, kind: output, shape index: {}]
  %s3 = sld [smem:[#allocation0]]
  $region26: #{tpu_custom_call.1} parent=0
    _
  %s5 = ssub.s32 1, %s3
  %s6 = scalar_select 0, %s5, %s3
  $region1: #{tpu_custom_call.1} parent=0
    #allocation2 [shape = 'u8[8192]{0}', space=vmem, size = 0x2000, scoped, tag = 'input window, operand 0, single buffered']
    #allocation3 [shape = 's32[1]{0}', space=sflag, size = 0x4, scoped, tag = 'scoped memory for tpu_custom_call.1']
    #allocation4 [shape = 's32[1]{0}', space=sflag, size = 0x4, scoped, tag = 'scoped memory for tpu_custom_call.1']
    #allocation5 [shape = 'u8[65536]{0}', space=vmem, size = 0x10000, scoped, tag = 'input window, operand 1, single buffered']
    #allocation6 [shape = 's32[1]{0}', space=sflag, size = 0x4, scoped, tag = 'scoped memory for tpu_custom_call.1']
    #allocation7 [shape = 'u8[8192]{0}', space=vmem, size = 0x2000, scoped, tag = 'output window, operand 0, single buffered']
    %7 = vsyncpa [#allocation3], 0
    %8 = vsyncpa [#allocation6], 0
    %9 = vsyncpa [#allocation4], 0
    // Predicated region
    $region2: #{tpu_custom_call.1} parent=1 // pred_check
      _
    $region3: #{tpu_custom_call.1} parent=1 // pred_check_branch
      %11 = sbr.rel (0) target = $region5
    $region4: #{tpu_custom_call.1} parent=1 // pred_region
      %s13 = ssub.s32 256, 256
      %14 = vsyncadd [#allocation3], %s13
      %s15 = sshll.u32 [#allocation2], 4
      %s16 = int_to_ptr.vmem [resolvable:$true] %s15
      %21 = dma.hbm_to_vmem [thread:$0]  %s0, 256, %s16, [#allocation3], 128, 128, 8
    $region5: #{tpu_custom_call.1} parent=1 // pred_fallthru
      _
    // Predicated region
    $region6: #{tpu_custom_call.1} parent=1 // pred_check
      _
    $region7: #{tpu_custom_call.1} parent=1 // pred_check_branch
      %23 = sbr.rel (0) target = $region9
    $region8: #{tpu_custom_call.1} parent=1 // pred_region
      %s25 = ssub.s32 2048, 2048
      %26 = vsyncadd [#allocation6], %s25
      %s27 = sshll.u32 [#allocation5], 4
      %s28 = int_to_ptr.vmem [resolvable:$true] %s27
      %33 = dma.hbm_to_vmem [thread:$0]  %s1, 2048, %s28, [#allocation6], 128, 128, 8
    $region9: #{tpu_custom_call.1} parent=1 // pred_fallthru
      _
    // Predicated region
    $region10: #{tpu_custom_call.1} parent=1 // pred_check
      _
    $region11: #{tpu_custom_call.1} parent=1 // pred_check_branch
      %35 = sbr.rel (0) target = $region13
    $region12: #{tpu_custom_call.1} parent=1 // pred_region
      %36 = dma.done [#allocation3], 256
    $region13: #{tpu_custom_call.1} parent=1 // pred_fallthru
      _
    // Predicated region
    $region14: #{tpu_custom_call.1} parent=1 // pred_check
      _
    $region15: #{tpu_custom_call.1} parent=1 // pred_check_branch
      %38 = sbr.rel (0) target = $region17
    $region16: #{tpu_custom_call.1} parent=1 // pred_region
      %39 = dma.done [#allocation6], 2048
    $region17: #{tpu_custom_call.1} parent=1 // pred_fallthru
      _
    %v40 = vld [vmem:[#allocation2] sm:$0xff]
    %v41 = vld [vmem:[#allocation2 + $0x8] sm:$0xff]
    %v42 = vld [vmem:[#allocation5] sm:$0xff]
    %v43 = vld [vmem:[#allocation5 + $0x8] sm:$0xff]
    %v44 = vld [vmem:[#allocation5 + $0x10] sm:$0xff]
    %v45 = vld [vmem:[#allocation5 + $0x18] sm:$0xff]
    %v46 = vld [vmem:[#allocation5 + $0x20] sm:$0xff]
    %v47 = vld [vmem:[#allocation5 + $0x28] sm:$0xff]
    %v48 = vld [vmem:[#allocation5 + $0x30] sm:$0xff]
    %v49 = vld [vmem:[#allocation5 + $0x38] sm:$0xff]
    %v50 = vld [vmem:[#allocation5 + $0x40] sm:$0xff]
    %v51 = vld [vmem:[#allocation5 + $0x48] sm:$0xff]
    %v52 = vld [vmem:[#allocation5 + $0x50] sm:$0xff]
    %v53 = vld [vmem:[#allocation5 + $0x58] sm:$0xff]
    %v54 = vld [vmem:[#allocation5 + $0x60] sm:$0xff]
    %v55 = vld [vmem:[#allocation5 + $0x68] sm:$0xff]
    %v56 = vld [vmem:[#allocation5 + $0x70] sm:$0xff]
    %v57 = vld [vmem:[#allocation5 + $0x78] sm:$0xff]
    %58 = vmatprep.subr.mxu0 0.0
    %59 = vmatpush1.msra.mxu0 %v42
    %60 = vmatprep.subr.mxu0 0.0
    %61 = vmatpush1.msra.mxu0 %v43
    %62 = vmatprep.subr.mxu0 0.0
    %63 = vmatpush1.msra.mxu0 %v44
    %64 = vmatprep.subr.mxu0 0.0
    %65 = vmatpush1.msra.mxu0 %v45
    %66 = vmatprep.subr.mxu0 0.0
    %67 = vmatpush1.msra.mxu0 %v46
    %68 = vmatprep.subr.mxu0 0.0
    %69 = vmatpush1.msra.mxu0 %v47
    %70 = vmatprep.subr.mxu0 0.0
    %71 = vmatpush1.msra.mxu0 %v48
    %72 = vmatprep.subr.mxu0 0.0
    %73 = vmatpush1.msra.mxu0 %v49
    %74 = vmatprep.subr.mxu0 0.0
    %75 = vmatpush1.msra.mxu0 %v50
    %76 = vmatprep.subr.mxu0 0.0
    %77 = vmatpush1.msra.mxu0 %v51
    %78 = vmatprep.subr.mxu0 0.0
    %79 = vmatpush1.msra.mxu0 %v52
    %80 = vmatprep.subr.mxu0 0.0
    %81 = vmatpush1.msra.mxu0 %v53
    %82 = vmatprep.subr.mxu0 0.0
    %83 = vmatpush1.msra.mxu0 %v54
    %84 = vmatprep.subr.mxu0 0.0
    %85 = vmatpush1.msra.mxu0 %v55
    %86 = vmatprep.subr.mxu0 0.0
    %87 = vmatpush1.msra.mxu0 %v56
    %88 = vmatprep.subr.mxu0 0.0
    %89 = vmatpush1.msra.mxu0 %v57
    %90 = vmatprep.subr.mxu0 0.0
    %91 = vmatpush1.msra.mxu0 0.0
    %92 = vmatprep.subr.mxu0 0.0
    %93 = vmatpush1.msra.mxu0 0.0
    %94 = vmatprep.subr.mxu0 0.0
    %95 = vmatpush1.msra.mxu0 0.0
    %96 = vmatprep.subr.mxu0 0.0
    %97 = vmatpush1.msra.mxu0 0.0
    %98 = vmatprep.subr.mxu0 0.0
    %99 = vmatpush1.msra.mxu0 0.0
    %100 = vmatprep.subr.mxu0 0.0
    %101 = vmatpush1.msra.mxu0 0.0
    %102 = vmatprep.subr.mxu0 0.0
    %103 = vmatpush1.msra.mxu0 0.0
    %104 = vmatprep.subr.mxu0 0.0
    %105 = vmatpush1.msra.mxu0 0.0
    %106 = vmatprep.subr.mxu0 0.0
    %107 = vmatpush1.msra.mxu0 0.0
    %108 = vmatprep.subr.mxu0 0.0
    %109 = vmatpush1.msra.mxu0 0.0
    %110 = vmatprep.subr.mxu0 0.0
    %111 = vmatpush1.msra.mxu0 0.0
    %112 = vmatprep.subr.mxu0 0.0
    %113 = vmatpush1.msra.mxu0 0.0
    %114 = vmatprep.subr.mxu0 0.0
    %115 = vmatpush1.msra.mxu0 0.0
    %116 = vmatprep.subr.mxu0 0.0
    %117 = vmatpush1.msra.mxu0 0.0
    %118 = vmatprep.subr.mxu0 0.0
    %119 = vmatpush1.msra.mxu0 0.0
    %120 = vmatprep.subr.mxu0 0.0
    %121 = vmatpush1.msra.mxu0 0.0
    %122 = vmatprep.mubr.f32.mxu0 0.0
    %123 = vmatmul.mubr.f32.gmra.mrb[0].mxu0 %v40
    %v124 = vpop.f32.mrb[0].mxu0
    %v125 = vadd.f32 %v40, %v124
    %v126 = vpop.f32.mrb[0].mxu0
    %127 = vmatprep.mubr.f32.mxu0 0.0
    %128 = vmatmul.mubr.f32.gmra.mrb[0].mxu0 %v41
    %v129 = vpop.f32.mrb[0].mxu0
    %v130 = vadd.f32 %v41, %v129
    %v131 = vpop.f32.mrb[0].mxu0
    %132 = vdwg.mxu0
    %133 = vst [vmem:[#allocation7] sm:$0xff] %v125
    %134 = vst [vmem:[#allocation7 + $0x8] sm:$0xff] %v130
    // Predicated region
    $region18: #{tpu_custom_call.1} parent=1 // pred_check
      _
    $region19: #{tpu_custom_call.1} parent=1 // pred_check_branch
      %136 = sbr.rel (0) target = $region21
    $region20: #{tpu_custom_call.1} parent=1 // pred_region
      %s138 = ssub.s32 256, 256
      %139 = vsyncadd [#allocation4], %s138
      %s140 = sshll.u32 [#allocation7], 4
      %s141 = int_to_ptr.vmem [resolvable:$true] %s140
      %146 = dma.vmem_to_hbm [thread:$0]  %s141, 256, %s2, [#allocation4], 128, 128, 8
    $region21: #{tpu_custom_call.1} parent=1 // pred_fallthru
      _
    // Predicated region
    $region22: #{tpu_custom_call.1} parent=1 // pred_check
      _
    $region23: #{tpu_custom_call.1} parent=1 // pred_check_branch
      %148 = sbr.rel (0) target = $region25
    $region24: #{tpu_custom_call.1} parent=1 // pred_region
      %149 = dma.done [#allocation4], 256
    $region25: #{tpu_custom_call.1} parent=1 // pred_fallthru
      _
    %150 = vsyncpa [#allocation3], 1
    %151 = vsyncpa [#allocation6], 1
    %152 = vsyncpa [#allocation4], 1

</llo_original>
